<compile_context>
chip_gen: v5e
topology: v5e:2x2
jax: 0.10.0
libtpu: 0.0.40
codegen_flags: <defaults>
</compile_context>

<pallas_src>
import jax
import jax.numpy as jnp
from jax.experimental import pallas as pl
from jax.experimental.pallas import tpu as pltpu


def _pos_enc_kernel(x_ref, emb_ref, o_ref):
    # x_ref: (TB, TC) tile of the flattened (B, S*D) input
    # emb_ref: (1, TC) tile of the flattened positional-embedding slab
    #          (broadcast over the TB rows -> plain per-vreg VPU add)
    # o_ref: (TB, TC) tile of the output, in the promoted dtype
    o_ref[...] = x_ref[...].astype(o_ref.dtype) + emb_ref[...].astype(o_ref.dtype)


def _sublane_align(dtype) -> int:
    # sublanes per vreg: f32 -> 8, bf16/f16 -> 16, int8/fp8 -> 32
    return max(8, 32 // jnp.dtype(dtype).itemsize)


def _is_v7x() -> bool:
    try:
        return "v7" in jax.devices()[0].device_kind.lower()
    except Exception:
        return False


def _default_tile_bytes() -> int:
    # 8 MiB x-tiles on v7x (3.2 TB/s HBM makes the ~0.35us/step overhead visible
    # at 4 MiB); 4 MiB on v5e/v6e where measurements show the roofline plateau.
    return (8 << 20) if _is_v7x() else (4 << 20)


def positional_encoding(x: jax.Array,
                        emb_table: jax.Array,
                        batched: bool = True,
                        max_tile_bytes: int | None = None,
                        min_kernel_bytes: int = 512 << 10,
                        donate_x: bool = False) -> jax.Array:
    """Add absolute positional embeddings to x using a Pallas TPU kernel."""
    squeeze_batch = False
    if not batched:
        # non-batched: x is (S, D); run the same path with B=1
        x = x[None, ...]
        squeeze_batch = True

    B, S, D = x.shape
    num_positions, d_model = emb_table.shape
    if d_model != D:
        raise ValueError(f"d_model mismatch: x has {D}, emb table has {d_model}")
    if S > num_positions:
        raise ValueError(f"sequence length {S} exceeds num_positions {num_positions}")

    out_dtype = jnp.result_type(x.dtype, emb_table.dtype)
    itemsize = jnp.dtype(x.dtype).itemsize
    emb_itemsize = jnp.dtype(emb_table.dtype).itemsize
    SD = S * D
    total_bytes = B * SD * itemsize

    # ---- small-input fast path: kernel launch overhead dominates -> plain XLA ----
    if total_bytes < min_kernel_bytes:
        out = x.astype(out_dtype) + emb_table[:S].astype(out_dtype)
        return out[0] if squeeze_batch else out

    if max_tile_bytes is None:
        max_tile_bytes = _default_tile_bytes()

    sub = _sublane_align(x.dtype)

    # Lane-dense flattening: (B, S, D) -> (B, S*D).
    x2 = x.reshape(B, SD)

    # ---- tile selection: rows first, then columns (budget always respected) ----
    TB = min(B, sub)                                      # minimal sublane-aligned row block
    col_budget = ((max_tile_bytes // (TB * itemsize)) // 128) * 128
    if SD <= max(col_budget, 128):
        # whole flattened row fits one tile -> grow the row dim to fill the budget
        TC = SD
        rows_budget = max(1, max_tile_bytes // (TC * itemsize))
        if rows_budget >= B:
            TB = B
        else:
            TB = min(B, max(TB, (rows_budget // sub) * sub))
    else:
        TC = max(128, col_budget)

    # v7x megacore: make sure there are >=2 grid steps along a parallel axis so
    # both TensorCores get work (single-step grids leave one core idle).
    if _is_v7x() and pl.cdiv(SD, TC) == 1 and pl.cdiv(B, TB) == 1 and SD >= 256:
        TC = ((pl.cdiv(SD, 2) + 127) // 128) * 128

    # Positional-embedding slab.  When TC is 128-aligned, pass the *full* table
    # flattened (no HBM slice/copy); rows 0..S-1 occupy exactly the first S*D
    # flattened columns.  Otherwise (TC == SD, odd width) slice the needed rows so
    # the block equals the full array extent.
    flat_cols = num_positions * D
    if TC % 128 == 0:
        emb_in = emb_table.reshape(1, flat_cols)
    else:
        emb_in = emb_table[:S].reshape(1, SD)

    # Grid: column tiles outer, row tiles inner -> emb block index constant across
    # the inner axis, so its DMA is issued once per column tile.
    grid = (pl.cdiv(SD, TC), pl.cdiv(B, TB))

    # Explicit scoped-VMEM limit: 2x(x tile) + 2x(out tile) + 2x(emb tile) + slack.
    tile_x_bytes = TB * TC * itemsize
    tile_o_bytes = TB * TC * jnp.dtype(out_dtype).itemsize
    tile_e_bytes = TC * emb_itemsize
    vmem_limit = 2 * tile_x_bytes + 2 * tile_o_bytes + 2 * tile_e_bytes + (4 << 20)
    vmem_limit = int(min(max(vmem_limit, 16 << 20), 56 << 20))

    cost = pl.CostEstimate(
        flops=B * SD,
        transcendentals=0,
        bytes_accessed=B * SD * itemsize + B * SD * jnp.dtype(out_dtype).itemsize
                       + SD * emb_itemsize,
    )

    kwargs = {}
    if donate_x and jnp.dtype(x.dtype) == jnp.dtype(out_dtype):
        # Reuse x's HBM buffer for the output (caller must not need x afterwards).
        kwargs["input_output_aliases"] = {0: 0}

    out2 = pl.pallas_call(
        _pos_enc_kernel,
        out_shape=jax.ShapeDtypeStruct((B, SD), out_dtype),
        grid_spec=pltpu.PrefetchScalarGridSpec(
            num_scalar_prefetch=0,
            grid=grid,
            in_specs=[
                pl.BlockSpec((TB, TC), lambda c, r: (r, c)),   # x tile
                pl.BlockSpec((1, TC), lambda c, r: (0, c)),    # shared emb slab tile
            ],
            out_specs=pl.BlockSpec((TB, TC), lambda c, r: (r, c)),
        ),
        compiler_params=pltpu.CompilerParams(
            dimension_semantics=("parallel", "parallel"),
            vmem_limit_bytes=vmem_limit,
        ),
        cost_estimate=cost,
        **kwargs,
    )(x2, emb_in)

    out = out2.reshape(B, S, D)
    if squeeze_batch:
        out = out[0]
    return out


if __name__ == "__main__":
    # Module hyper-params (shapes implied by __init__ / forward)
    d_model = 32
    num_positions = 20
    batch = 2
    seq = 8  # must be <= num_positions

    key = jax.random.PRNGKey(0)
    k_emb, k_x = jax.random.split(key)

    # Deterministic "nn.Embedding" weight (N(0,1) like PyTorch default init)
    emb_table = jax.random.normal(k_emb, (num_positions, d_model), dtype=jnp.float32)

    # Batched input embeddings (B, S, D)
    x = jax.random.normal(k_x, (batch, seq, d_model), dtype=jnp.float32)
    ref = x + emb_table[:seq][None, :, :]

    # 1) Batched, forced through the Pallas kernel (min_kernel_bytes=0 disables
    #    the small-input XLA fast path so the kernel itself is exercised).
    out = jax.block_until_ready(
        positional_encoding(x, emb_table, batched=True, min_kernel_bytes=0))
    assert out.shape == x.shape
    assert jnp.allclose(out, ref, atol=1e-6, rtol=1e-6), "mismatch (batched, kernel)"

    # 2) Batched, default path (tiny input -> XLA fast path).
    out_fp = jax.block_until_ready(positional_encoding(x, emb_table, batched=True))
    assert jnp.allclose(out_fp, ref, atol=1e-6, rtol=1e-6), "mismatch (fast path)"

    # 3) Non-batched path (x: (S, D)), forced through the kernel.
    x_nb = x[0]
    out_nb = jax.block_until_ready(
        positional_encoding(x_nb, emb_table, batched=False, min_kernel_bytes=0))
    ref_nb = x_nb + emb_table[:seq]
    assert out_nb.shape == x_nb.shape
    assert jnp.allclose(out_nb, ref_nb, atol=1e-6, rtol=1e-6), "mismatch (non-batched)"

    print("KERNEL_OK")
</pallas_src>

<mosaic_0001>
module attributes {stable_mosaic.version = 11 : i64} {
  func.func @_pos_enc_kernel(%arg0: i32, %arg1: i32, %arg2: memref<2x256xf32, #tpu.memory_space<vmem>>, %arg3: memref<1x256xf32, #tpu.memory_space<vmem>>, %arg4: memref<2x256xf32, #tpu.memory_space<vmem>>) attributes {dimension_semantics = [#tpu.dimension_semantics<parallel>, #tpu.dimension_semantics<parallel>], iteration_bounds = array<i64: 1, 1>, scalar_prefetch = 0 : i64, scratch_operands = 0 : i64, tpu.core_type = #tpu.core_type<tc>, window_params = [{transform_indices = @transform_0, window_bounds = array<i64: 2, 256>}, {transform_indices = @transform_1, window_bounds = array<i64: 1, 256>}, {transform_indices = @transform_2, window_bounds = array<i64: 2, 256>}]} {
    %c0 = arith.constant 0 : index
    %c0_0 = arith.constant 0 : index
    %0 = vector.load %arg2[%c0, %c0_0] : memref<2x256xf32, #tpu.memory_space<vmem>>, vector<2x256xf32>
    %c0_1 = arith.constant 0 : index
    %c0_2 = arith.constant 0 : index
    %1 = vector.load %arg3[%c0_1, %c0_2] : memref<1x256xf32, #tpu.memory_space<vmem>>, vector<1x256xf32>
    %2 = vector.broadcast %1 : vector<1x256xf32> to vector<2x256xf32>
    %3 = arith.addf %0, %2 : vector<2x256xf32>
    %c0_3 = arith.constant 0 : index
    %c0_4 = arith.constant 0 : index
    %4 = vector.load %arg4[%c0_3, %c0_4] : memref<2x256xf32, #tpu.memory_space<vmem>>, vector<2x256xf32>
    tpu.vector_store %arg4[%c0_3, %c0_4], %3 {strides = array<i32>} : memref<2x256xf32, #tpu.memory_space<vmem>>, vector<2x256xf32>,
    return
  }
  func.func @transform_0(%arg0: i32, %arg1: i32) -> (i32, i32) {
    %c0_i32 = arith.constant 0 : i32
    return %arg1, %arg0 : i32, i32
  }
  func.func @transform_1(%arg0: i32, %arg1: i32) -> (i32, i32) {
    %c0_i32 = arith.constant 0 : i32
    %c0_i32_0 = arith.constant 0 : i32
    return %c0_i32, %arg0 : i32, i32
  }
  func.func @transform_2(%arg0: i32, %arg1: i32) -> (i32, i32) {
    %c0_i32 = arith.constant 0 : i32
    return %arg1, %arg0 : i32, i32
  }
}

</mosaic_0001>

<llo_original>
// kernel: tpu_custom_call.1
$region0: #{tpu_custom_call.1}
  #allocation0 [shape = 'u32[]', space=smem, size = 0x4, offset = 0x4, fixed_abs, tag = 'smem constant byte address 0x4 - core index']
  #allocation1 [shape = 'u32[72,128]{1,0:T(1,128)}', space=vmem, size = 0x9000, scoped, tag = 'internal scratch']
  %s0 = inlined_call_operand.hbm [shape: f32[2,256], index: 0, kind: input, shape index: {}]
  %s1 = inlined_call_operand.hbm [shape: f32[1,640], index: 1, kind: input, shape index: {}]
  %s2 = inlined_call_operand.hbm [shape: f32[2,256], index: 2, kind: output, shape index: {}]
  %s3 = sld [smem:[#allocation0]]
  $region26: #{tpu_custom_call.1} parent=0
    _
  %s5 = ssub.s32 1, %s3
  %s6 = scalar_select 0, %s5, %s3
  $region1: #{tpu_custom_call.1} parent=0
    #allocation2 [shape = 'u8[2048]{0}', space=vmem, size = 0x800, scoped, tag = 'input window, operand 0, single buffered']
    #allocation3 [shape = 's32[1]{0}', space=sflag, size = 0x4, scoped, tag = 'scoped memory for tpu_custom_call.1']
    #allocation4 [shape = 's32[1]{0}', space=sflag, size = 0x4, scoped, tag = 'scoped memory for tpu_custom_call.1']
    #allocation5 [shape = 'u8[1024]{0}', space=vmem, size = 0x400, scoped, tag = 'input window, operand 1, single buffered']
    #allocation6 [shape = 's32[1]{0}', space=sflag, size = 0x4, scoped, tag = 'scoped memory for tpu_custom_call.1']
    #allocation7 [shape = 'u8[2048]{0}', space=vmem, size = 0x800, scoped, tag = 'output window, operand 0, single buffered']
    %7 = vsyncpa [#allocation3], 0
    %8 = vsyncpa [#allocation6], 0
    %9 = vsyncpa [#allocation4], 0
    // Predicated region
    $region2: #{tpu_custom_call.1} parent=1 // pred_check
      _
    $region3: #{tpu_custom_call.1} parent=1 // pred_check_branch
      %11 = sbr.rel (0) target = $region5
    $region4: #{tpu_custom_call.1} parent=1 // pred_region
      %13 = vsyncadd [#allocation3], 0
      %s15 = sshll.u32 %s0, 4
      %s16 = int_to_ptr.hbm [resolvable:$true] %s15
      %s17 = sshll.u32 [#allocation2], 4
      %s18 = int_to_ptr.vmem [resolvable:$true] %s17
      %20 = dma.hbm_to_vmem [thread:$0]  %s16, 64, %s18, [#allocation3]
    $region5: #{tpu_custom_call.1} parent=1 // pred_fallthru
      _
    // Predicated region
    $region6: #{tpu_custom_call.1} parent=1 // pred_check
      _
    $region7: #{tpu_custom_call.1} parent=1 // pred_check_branch
      %22 = sbr.rel (0) target = $region9
    $region8: #{tpu_custom_call.1} parent=1 // pred_region
      %24 = vsyncadd [#allocation6], 0
      %s26 = sshll.u32 %s1, 4
      %s27 = int_to_ptr.hbm [resolvable:$true] %s26
      %s28 = sshll.u32 [#allocation5], 4
      %s29 = int_to_ptr.vmem [resolvable:$true] %s28
      %31 = dma.hbm_to_vmem [thread:$0]  %s27, 32, %s29, [#allocation6]
    $region9: #{tpu_custom_call.1} parent=1 // pred_fallthru
      _
    // Predicated region
    $region10: #{tpu_custom_call.1} parent=1 // pred_check
      _
    $region11: #{tpu_custom_call.1} parent=1 // pred_check_branch
      %33 = sbr.rel (0) target = $region13
    $region12: #{tpu_custom_call.1} parent=1 // pred_region
      %35 = dma.done [#allocation3], 64
    $region13: #{tpu_custom_call.1} parent=1 // pred_fallthru
      _
    // Predicated region
    $region14: #{tpu_custom_call.1} parent=1 // pred_check
      _
    $region15: #{tpu_custom_call.1} parent=1 // pred_check_branch
      %37 = sbr.rel (0) target = $region17
    $region16: #{tpu_custom_call.1} parent=1 // pred_region
      %39 = dma.done [#allocation6], 32
    $region17: #{tpu_custom_call.1} parent=1 // pred_fallthru
      _
    %v40 = vld [vmem:[#allocation2] sm:$0xf]
    %v41 = vld [vmem:[#allocation5] sm:$0x3]
    %v43 = vperm.slane %v41, 0
    %v44 = vperm.slane %v41, 1
    %v45 = vrot.slane %v44, 6
    %vm46 = vcmask 1041408
    %v47 = vsel %vm46, %v43, %v45
    %v49 = vadd.f32 %v40, %v47
    %50 = vst [vmem:[#allocation7] sm:$0xf] %v49
    // Predicated region
    $region18: #{tpu_custom_call.1} parent=1 // pred_check
      _
    $region19: #{tpu_custom_call.1} parent=1 // pred_check_branch
      %52 = sbr.rel (0) target = $region21
    $region20: #{tpu_custom_call.1} parent=1 // pred_region
      %54 = vsyncadd [#allocation4], 0
      %s56 = sshll.u32 [#allocation7], 4
      %s57 = int_to_ptr.vmem [resolvable:$true] %s56
      %s58 = sshll.u32 %s2, 4
      %s59 = int_to_ptr.hbm [resolvable:$true] %s58
      %61 = dma.vmem_to_hbm [thread:$0]  %s57, 64, %s59, [#allocation4]
    $region21: #{tpu_custom_call.1} parent=1 // pred_fallthru
      _
    // Predicated region
    $region22: #{tpu_custom_call.1} parent=1 // pred_check
      _
    $region23: #{tpu_custom_call.1} parent=1 // pred_check_branch
      %63 = sbr.rel (0) target = $region25
    $region24: #{tpu_custom_call.1} parent=1 // pred_region
      %65 = dma.done [#allocation4], 64
    $region25: #{tpu_custom_call.1} parent=1 // pred_fallthru
      _
    %66 = vsyncpa [#allocation3], 1
    %67 = vsyncpa [#allocation6], 1
    %68 = vsyncpa [#allocation4], 1

</llo_original>
